<compile_context>
chip_gen: v7x
topology: tpu7x:2x2x1
jax: 0.10.0
libtpu: 0.0.40
codegen_flags: <defaults>
</compile_context>

<pallas_src>
import math

import jax
import jax.numpy as jnp
from jax.experimental import pallas as pl
from jax.experimental.pallas import tpu as pltpu


def build_pe_table(max_len: int, n_embed: int, dtype=jnp.float32):
    """Deterministic sinusoidal table, identical to the PyTorch __init__."""
    position = jnp.arange(max_len, dtype=jnp.float32)[:, None]               # (max_len, 1)
    div_term = jnp.exp(
        jnp.arange(0, n_embed, 2, dtype=jnp.float32) * (-math.log(10000.0) / n_embed)
    )                                                                         # (n_embed//2,)
    pe = jnp.zeros((max_len, 1, n_embed), dtype=jnp.float32)
    pe = pe.at[:, 0, 0::2].set(jnp.sin(position * div_term))
    pe = pe.at[:, 0, 1::2].set(jnp.cos(position * div_term))
    return pe.astype(dtype)


def _add_kernel(x_ref, p_ref, o_ref):
    # Pure elementwise broadcast-add (VPU only); kernel is HBM-bandwidth bound.
    o_ref[...] = x_ref[...] + p_ref[...]


def _choose_seq_tile(S: int, bytes_per_row: int, budget_bytes: int = 8 * 1024 * 1024) -> int:
    """Largest seq tile (multiple of 8) whose double-buffered footprint fits budget.

    bytes_per_row = bytes moved per seq row per grid step (x + out + pe).
    An 8 MiB budget keeps 2x-buffered blocks far below the 32 MiB scoped-VMEM
    default on every generation (and well under v7x's 64 MiB physical VMEM).
    """
    ts = max(8, budget_bytes // max(1, 2 * bytes_per_row))
    ts = (ts // 8) * 8
    if ts >= S:
        return S
    return max(8, ts)


def positional_encoding_wave(x, mask, pe_table, dropout_p: float = 0.1, seq_tile=None):
    """x: (S, B, E); mask broadcastable against pe[:S] of shape (S, 1, E).

    Returns x + pe[:S].masked_fill(mask == 0, 0); dropout is eval-mode identity.
    """
    S, B, E = x.shape
    pe = pe_table[:S]                                                # (S, 1, E)

    # masked_fill(mask == 0, 0): applied in the wrapper on the small pe table so
    # the kernel never reads a mask stream from HBM.  Result is the broadcast of
    # mask and (S, 1, E), i.e. (S, P, E) with P in {1, B}.
    pos = jnp.where(mask == 0, jnp.zeros((), x.dtype), pe).astype(x.dtype)
    if pos.ndim == 2:
        pos = pos[:, None, :]
    P = pos.shape[1]

    itemsize = jnp.dtype(x.dtype).itemsize
    dim_sem = pltpu.CompilerParams(dimension_semantics=("parallel",))

    # 3D path only when both minor dims are dense: E fills lanes (128) and B fills
    # sublanes (8).  Otherwise fold (B, E) -> one last dim to avoid sublane-padded
    # DMAs / masked partial stores for small batch sizes.
    use_3d = (E % 128 == 0) and (B % 8 == 0)

    if use_3d:
        # pe stays un-duplicated; kernel broadcasts it over the batch (sublane) axis,
        # so pe traffic is P/B of the x traffic.
        bytes_per_row = (2 * B + P) * E * itemsize                   # x + out + pos per seq row
        TS = seq_tile if seq_tile is not None else _choose_seq_tile(S, bytes_per_row)
        out = pl.pallas_call(
            _add_kernel,
            out_shape=jax.ShapeDtypeStruct((S, B, E), x.dtype),
            grid=(pl.cdiv(S, TS),),
            in_specs=[
                pl.BlockSpec((TS, B, E), lambda i: (i, 0, 0)),
                pl.BlockSpec((TS, P, E), lambda i: (i, 0, 0)),
            ],
            out_specs=pl.BlockSpec((TS, B, E), lambda i: (i, 0, 0)),
            compiler_params=dim_sem,
        )(x, pos)
    else:
        # Fold (B, E) into one lane axis (contiguous reshape, no transpose); pe is
        # expanded across batch in the wrapper to match.
        C = B * E
        x2 = x.reshape(S, C)
        pos2 = jnp.broadcast_to(pos, (S, B, E)).reshape(S, C)
        bytes_per_row = 3 * C * itemsize                             # x + out + pos per seq row
        TS = seq_tile if seq_tile is not None else _choose_seq_tile(S, bytes_per_row)
        out = pl.pallas_call(
            _add_kernel,
            out_shape=jax.ShapeDtypeStruct((S, C), x.dtype),
            grid=(pl.cdiv(S, TS),),
            in_specs=[
                pl.BlockSpec((TS, C), lambda i: (i, 0)),
                pl.BlockSpec((TS, C), lambda i: (i, 0)),
            ],
            out_specs=pl.BlockSpec((TS, C), lambda i: (i, 0)),
            compiler_params=dim_sem,
        )(x2, pos2).reshape(S, B, E)

    # Dropout: eval-mode identity (self.dropout with module.eval()).
    # TODO(synk): training-mode stochastic dropout (pltpu.prng_*) not implemented.
    del dropout_p
    return out


def _reference(x, mask, pe_table):
    S = x.shape[0]
    pe = pe_table[:S]
    pos = jnp.where(mask == 0, 0.0, pe)
    return x + pos


if __name__ == "__main__":
    key = jax.random.PRNGKey(0)

    # --- Test 1: module-consistent small shapes (seq=8, batch=2, n_embed=32): folded path. ---
    max_len, n_embed, seq_len, batch = 16, 32, 8, 2
    k1, k2, key = jax.random.split(key, 3)
    x = jax.random.normal(k1, (seq_len, batch, n_embed), dtype=jnp.float32)
    mask = (jax.random.uniform(k2, (seq_len, 1, n_embed)) > 0.3).astype(jnp.int32)
    pe_table = build_pe_table(max_len, n_embed)

    out = positional_encoding_wave(x, mask, pe_table, dropout_p=0.1)
    out = jax.block_until_ready(out)
    ref = _reference(x, mask, pe_table)
    assert out.shape == (seq_len, batch, n_embed)
    assert jnp.allclose(out, ref, atol=1e-6), "mismatch vs reference (folded path, small E)"

    # --- Test 2: E=128 but batch=2 (< 8): folded lane-dense path with a real multi-tile grid. ---
    max_len2, n_embed2, seq_len2, batch2 = 32, 128, 24, 2
    k3, k4, key = jax.random.split(key, 3)
    x2 = jax.random.normal(k3, (seq_len2, batch2, n_embed2), dtype=jnp.float32)
    mask2 = (jax.random.uniform(k4, (seq_len2, 1, n_embed2)) > 0.3).astype(jnp.int32)
    pe_table2 = build_pe_table(max_len2, n_embed2)

    out2 = positional_encoding_wave(x2, mask2, pe_table2, dropout_p=0.1, seq_tile=8)
    out2 = jax.block_until_ready(out2)
    ref2 = _reference(x2, mask2, pe_table2)
    assert out2.shape == (seq_len2, batch2, n_embed2)
    assert jnp.allclose(out2, ref2, atol=1e-6), "mismatch vs reference (folded lane-dense path)"

    # --- Test 3: E=128, batch=8: 3D sublane/lane-dense path with in-kernel pe broadcast. ---
    max_len3, n_embed3, seq_len3, batch3 = 32, 128, 16, 8
    k5, k6, key = jax.random.split(key, 3)
    x3 = jax.random.normal(k5, (seq_len3, batch3, n_embed3), dtype=jnp.float32)
    mask3 = (jax.random.uniform(k6, (seq_len3, 1, n_embed3)) > 0.3).astype(jnp.int32)
    pe_table3 = build_pe_table(max_len3, n_embed3)

    out3 = positional_encoding_wave(x3, mask3, pe_table3, dropout_p=0.1, seq_tile=8)
    out3 = jax.block_until_ready(out3)
    ref3 = _reference(x3, mask3, pe_table3)
    assert out3.shape == (seq_len3, batch3, n_embed3)
    assert jnp.allclose(out3, ref3, atol=1e-6), "mismatch vs reference (3D dense path)"

    print("KERNEL_OK")
</pallas_src>

<mosaic_0001>
module attributes {stable_mosaic.version = 11 : i64} {
  func.func @_add_kernel(%arg0: i32, %arg1: memref<8x64xf32, #tpu.memory_space<vmem>>, %arg2: memref<8x64xf32, #tpu.memory_space<vmem>>, %arg3: memref<8x64xf32, #tpu.memory_space<vmem>>) attributes {dimension_semantics = [#tpu.dimension_semantics<parallel>], iteration_bounds = array<i64: 1>, scalar_prefetch = 0 : i64, scratch_operands = 0 : i64, tpu.core_type = #tpu.core_type<tc>, window_params = [{transform_indices = @transform_0, window_bounds = array<i64: 8, 64>}, {transform_indices = @transform_1, window_bounds = array<i64: 8, 64>}, {transform_indices = @transform_2, window_bounds = array<i64: 8, 64>}]} {
    %c0 = arith.constant 0 : index
    %c0_0 = arith.constant 0 : index
    %0 = vector.load %arg1[%c0, %c0_0] : memref<8x64xf32, #tpu.memory_space<vmem>>, vector<8x64xf32>
    %c0_1 = arith.constant 0 : index
    %c0_2 = arith.constant 0 : index
    %1 = vector.load %arg2[%c0_1, %c0_2] : memref<8x64xf32, #tpu.memory_space<vmem>>, vector<8x64xf32>
    %2 = arith.addf %0, %1 : vector<8x64xf32>
    %c0_3 = arith.constant 0 : index
    %c0_4 = arith.constant 0 : index
    %3 = vector.load %arg3[%c0_3, %c0_4] : memref<8x64xf32, #tpu.memory_space<vmem>>, vector<8x64xf32>
    tpu.vector_store %arg3[%c0_3, %c0_4], %2 {strides = array<i32>} : memref<8x64xf32, #tpu.memory_space<vmem>>, vector<8x64xf32>,
    return
  }
  func.func @transform_0(%arg0: i32) -> (i32, i32) {
    %c0_i32 = arith.constant 0 : i32
    %c0_i32_0 = arith.constant 0 : i32
    return %arg0, %c0_i32 : i32, i32
  }
  func.func @transform_1(%arg0: i32) -> (i32, i32) {
    %c0_i32 = arith.constant 0 : i32
    %c0_i32_0 = arith.constant 0 : i32
    return %arg0, %c0_i32 : i32, i32
  }
  func.func @transform_2(%arg0: i32) -> (i32, i32) {
    %c0_i32 = arith.constant 0 : i32
    %c0_i32_0 = arith.constant 0 : i32
    return %arg0, %c0_i32 : i32, i32
  }
}

</mosaic_0001>

<llo_original>
// kernel: tpu_custom_call.1
$region0: #{tpu_custom_call.1}
  #allocation0 [shape = 'u32[]', space=smem, size = 0x4, offset = 0x4, fixed_abs, tag = 'smem constant byte address 0x4 - core index']
  #allocation1 [shape = 'u32[144,128]{1,0:T(1,128)}', space=vmem, size = 0x12000, scoped, tag = 'internal scratch']
  %s0 = inlined_call_operand.hbm [shape: f32[8,64], index: 0, kind: input, shape index: {}]
  %s1 = inlined_call_operand.hbm [shape: f32[8,64], index: 1, kind: input, shape index: {}]
  %s2 = inlined_call_operand.hbm [shape: f32[8,64], index: 2, kind: output, shape index: {}]
  %s3 = sld [smem:[#allocation0]]
  $region26: #{tpu_custom_call.1} parent=0
    _
  %s5 = ssub.s32 1, %s3
  %s6 = scalar_select 0, %s5, %s3
  $region1: #{tpu_custom_call.1} parent=0
    #allocation2 [shape = 'u8[4096]{0}', space=vmem, size = 0x1000, scoped, tag = 'input window, operand 0, single buffered']
    #allocation3 [shape = 's32[1]{0}', space=sflag, size = 0x4, scoped, tag = 'scoped memory for tpu_custom_call.1']
    #allocation4 [shape = 's32[1]{0}', space=sflag, size = 0x4, scoped, tag = 'scoped memory for tpu_custom_call.1']
    #allocation5 [shape = 'u8[4096]{0}', space=vmem, size = 0x1000, scoped, tag = 'input window, operand 1, single buffered']
    #allocation6 [shape = 's32[1]{0}', space=sflag, size = 0x4, scoped, tag = 'scoped memory for tpu_custom_call.1']
    #allocation7 [shape = 'u8[4096]{0}', space=vmem, size = 0x1000, scoped, tag = 'output window, operand 0, single buffered']
    %7 = vsyncpa [#allocation3], 0
    %8 = vsyncpa [#allocation6], 0
    %9 = vsyncpa [#allocation4], 0
    // Predicated region
    $region2: #{tpu_custom_call.1} parent=1 // pred_check
      _
    $region3: #{tpu_custom_call.1} parent=1 // pred_check_branch
      %11 = sbr.rel (0) target = $region5
    $region4: #{tpu_custom_call.1} parent=1 // pred_region
      %s13 = ssub.s32 128, 128
      %14 = vsyncadd [#allocation3], %s13
      %s16 = sshll.u32 [#allocation2], 4
      %s17 = int_to_ptr.vmem [resolvable:$true] %s16
      %19 = dma.hbm_to_vmem [thread:$0]  %s0, 128, %s17, [#allocation3]
    $region5: #{tpu_custom_call.1} parent=1 // pred_fallthru
      _
    // Predicated region
    $region6: #{tpu_custom_call.1} parent=1 // pred_check
      _
    $region7: #{tpu_custom_call.1} parent=1 // pred_check_branch
      %21 = sbr.rel (0) target = $region9
    $region8: #{tpu_custom_call.1} parent=1 // pred_region
      %s23 = ssub.s32 128, 128
      %24 = vsyncadd [#allocation6], %s23
      %s26 = sshll.u32 [#allocation5], 4
      %s27 = int_to_ptr.vmem [resolvable:$true] %s26
      %29 = dma.hbm_to_vmem [thread:$0]  %s1, 128, %s27, [#allocation6]
    $region9: #{tpu_custom_call.1} parent=1 // pred_fallthru
      _
    // Predicated region
    $region10: #{tpu_custom_call.1} parent=1 // pred_check
      _
    $region11: #{tpu_custom_call.1} parent=1 // pred_check_branch
      %31 = sbr.rel (0) target = $region13
    $region12: #{tpu_custom_call.1} parent=1 // pred_region
      %32 = dma.done [#allocation3], 128
    $region13: #{tpu_custom_call.1} parent=1 // pred_fallthru
      _
    // Predicated region
    $region14: #{tpu_custom_call.1} parent=1 // pred_check
      _
    $region15: #{tpu_custom_call.1} parent=1 // pred_check_branch
      %34 = sbr.rel (0) target = $region17
    $region16: #{tpu_custom_call.1} parent=1 // pred_region
      %35 = dma.done [#allocation6], 128
    $region17: #{tpu_custom_call.1} parent=1 // pred_fallthru
      _
    %v36 = vld [vmem:[#allocation2] sm:$0xff]
    %v37 = vld [vmem:[#allocation5] sm:$0xff]
    %v38 = vadd.f32 %v36, %v37
    %vm39 = vcmask 523264
    %40 = vst.msk [vmem:[#allocation7] sm:$0xff] %vm39, %v38
    // Predicated region
    $region18: #{tpu_custom_call.1} parent=1 // pred_check
      _
    $region19: #{tpu_custom_call.1} parent=1 // pred_check_branch
      %42 = sbr.rel (0) target = $region21
    $region20: #{tpu_custom_call.1} parent=1 // pred_region
      %s44 = ssub.s32 128, 128
      %45 = vsyncadd [#allocation4], %s44
      %s47 = sshll.u32 [#allocation7], 4
      %s48 = int_to_ptr.vmem [resolvable:$true] %s47
      %50 = dma.vmem_to_hbm [thread:$0]  %s48, 128, %s2, [#allocation4]
    $region21: #{tpu_custom_call.1} parent=1 // pred_fallthru
      _
    // Predicated region
    $region22: #{tpu_custom_call.1} parent=1 // pred_check
      _
    $region23: #{tpu_custom_call.1} parent=1 // pred_check_branch
      %52 = sbr.rel (0) target = $region25
    $region24: #{tpu_custom_call.1} parent=1 // pred_region
      %53 = dma.done [#allocation4], 128
    $region25: #{tpu_custom_call.1} parent=1 // pred_fallthru
      _
    %54 = vsyncpa [#allocation3], 1
    %55 = vsyncpa [#allocation6], 1
    %56 = vsyncpa [#allocation4], 1

</llo_original>
